<compile_context>
chip_gen: v7x
topology: tpu7x:2x2x1
jax: 0.10.0
libtpu: 0.0.40
codegen_flags: <defaults>
</compile_context>

<pallas_src>
import functools

import jax
import jax.numpy as jnp
from jax.experimental import pallas as pl
from jax.experimental.pallas import tpu as pltpu


def _round_up(x, m):
    return (x + m - 1) // m * m


def _fused_matmul_bn_act_kernel(x_ref, w_ref, shift_ref, o_ref, *, negative_slope):
    # x_ref:     (block_m, kkc_pad)   im2col rows for this block (bf16 or f32)
    # w_ref:     (kkc_pad, cout_pad)  conv weights with BN scale folded in
    # shift_ref: (1, cout_pad)        BN shift (beta - mean * scale)
    # o_ref:     (block_m, cout_pad)  lane-dense f32 output
    acc = jnp.dot(x_ref[...], w_ref[...], preferred_element_type=jnp.float32)
    y = acc + shift_ref[...]
    o_ref[...] = jnp.where(y > 0, y, negative_slope * y)


def dbl_block_nchw(x_nchw, w_oihw, gamma, beta, running_mean, running_var, *,
                   kernel, eps=1e-5, negative_slope=0.01, block_m=256,
                   use_bf16=True):
    """DBLBlock forward (bn_act=True, stride=1, groups=1): NCHW in, NCHW out."""
    N, Cin, H, W = x_nchw.shape
    Cout = w_oihw.shape[0]
    K = kernel
    p = K // 2  # pad(k) from the PyTorch module, stride=1 -> "same" conv

    # ---- fold BatchNorm (inference, running stats) into weights + shift ----
    scale = gamma / jnp.sqrt(running_var + eps)          # (Cout,)
    shift = beta - running_mean * scale                  # (Cout,)

    # OIHW -> (K*K*Cin, Cout); row index = (kh*K + kw)*Cin + cin (matches im2col).
    w_mat = jnp.transpose(w_oihw, (2, 3, 1, 0)).reshape(K * K * Cin, Cout)
    w_mat = w_mat * scale[None, :]                       # conv(x, w)*s == conv(x, w*s)

    # ---- im2col (done once, outside the kernel) ----
    x_nhwc = jnp.transpose(x_nchw, (0, 2, 3, 1))
    x_pad = jnp.pad(x_nhwc, ((0, 0), (p, p), (p, p), (0, 0)))
    cols = jnp.concatenate(
        [x_pad[:, kh:kh + H, kw:kw + W, :] for kh in range(K) for kw in range(K)],
        axis=-1)                                          # (N, H, W, K*K*Cin)
    M = N * H * W
    KKC = K * K * Cin
    cols = cols.reshape(M, KKC)

    # ---- TPU-friendly padding ----
    kkc_pad = _round_up(KKC, 8)            # sublane-aligned contraction dim
    cout_pad = _round_up(Cout, 128)        # lane-dense output: no masked stores
    block_m = min(block_m, _round_up(M, 8))
    m_pad = _round_up(M, block_m)

    cols = jnp.pad(cols, ((0, m_pad - M), (0, kkc_pad - KKC)))
    w_mat = jnp.pad(w_mat, ((0, kkc_pad - KKC), (0, cout_pad - Cout)))
    shift_row = jnp.pad(shift, (0, cout_pad - Cout)).reshape(1, cout_pad)
    shift_row = shift_row.astype(jnp.float32)

    op_dtype = jnp.bfloat16 if use_bf16 else jnp.float32
    cols = cols.astype(op_dtype)
    w_mat = w_mat.astype(op_dtype)

    kernel_fn = functools.partial(_fused_matmul_bn_act_kernel,
                                  negative_slope=negative_slope)

    out = pl.pallas_call(
        kernel_fn,
        out_shape=jax.ShapeDtypeStruct((m_pad, cout_pad), jnp.float32),
        grid_spec=pltpu.PrefetchScalarGridSpec(
            num_scalar_prefetch=0,
            grid=(m_pad // block_m,),
            in_specs=[
                pl.BlockSpec((block_m, kkc_pad), lambda i: (i, 0)),
                pl.BlockSpec((kkc_pad, cout_pad), lambda i: (0, 0)),
                pl.BlockSpec((1, cout_pad), lambda i: (0, 0)),
            ],
            out_specs=pl.BlockSpec((block_m, cout_pad), lambda i: (i, 0)),
        ),
        compiler_params=pltpu.CompilerParams(
            dimension_semantics=("parallel",)),
    )(cols, w_mat, shift_row)

    y = out[:M, :Cout].reshape(N, H, W, Cout)
    return jnp.transpose(y, (0, 3, 1, 2))


def _reference_nchw(x_nchw, w_oihw, gamma, beta, running_mean, running_var,
                    *, kernel, eps=1e-5, negative_slope=0.01):
    p = kernel // 2
    y = jax.lax.conv_general_dilated(
        x_nchw, w_oihw, window_strides=(1, 1),
        padding=[(p, p), (p, p)],
        dimension_numbers=("NCHW", "OIHW", "NCHW"))
    scale = (gamma / jnp.sqrt(running_var + eps)).reshape(1, -1, 1, 1)
    shift = (beta - running_mean * gamma / jnp.sqrt(running_var + eps)).reshape(1, -1, 1, 1)
    y = y * scale + shift
    return jnp.where(y > 0, y, negative_slope * y)


if __name__ == "__main__":
    # DBLBlock(in_channels=4, out_channels=8, kernel=3, stride=1, bn_act=True)
    N, Cin, H, W = 2, 4, 16, 16
    Cout, K = 8, 3

    key = jax.random.PRNGKey(0)
    kx, kw, kg, kb, km, kv = jax.random.split(key, 6)

    x = jax.random.normal(kx, (N, Cin, H, W), dtype=jnp.float32)
    # Conv2d weight (bias=False since bn_act=True): (Cout, Cin, K, K)
    w = jax.random.normal(kw, (Cout, Cin, K, K), dtype=jnp.float32) * 0.1
    # BatchNorm2d params / running stats (deterministic, non-trivial).
    gamma = 1.0 + 0.1 * jax.random.normal(kg, (Cout,), dtype=jnp.float32)
    beta = 0.1 * jax.random.normal(kb, (Cout,), dtype=jnp.float32)
    running_mean = 0.1 * jax.random.normal(km, (Cout,), dtype=jnp.float32)
    running_var = jnp.abs(jax.random.normal(kv, (Cout,), dtype=jnp.float32)) + 0.5

    ref = _reference_nchw(x, w, gamma, beta, running_mean, running_var, kernel=K)

    # f32-operand path: tight numerical check of the fused kernel math.
    out_f32 = dbl_block_nchw(x, w, gamma, beta, running_mean, running_var,
                             kernel=K, use_bf16=False)
    out_f32 = jax.block_until_ready(out_f32)
    assert out_f32.shape == (N, Cout, H, W)
    assert jnp.allclose(out_f32, ref, atol=1e-3, rtol=1e-3), "f32 path mismatch"

    # bf16-MXU path (default / fast): f32 accumulation, looser tolerance.
    out = dbl_block_nchw(x, w, gamma, beta, running_mean, running_var, kernel=K)
    out = jax.block_until_ready(out)
    assert out.shape == (N, Cout, H, W)
    assert jnp.allclose(out, ref, atol=5e-2, rtol=5e-2), "bf16 path mismatch"

    print("KERNEL_OK")
</pallas_src>

<mosaic_0001>
module attributes {stable_mosaic.version = 11 : i64} {
  func.func @_fused_matmul_bn_act_kernel(%arg0: i32, %arg1: memref<256x40xf32, #tpu.memory_space<vmem>>, %arg2: memref<40x128xf32, #tpu.memory_space<vmem>>, %arg3: memref<1x128xf32, #tpu.memory_space<vmem>>, %arg4: memref<256x128xf32, #tpu.memory_space<vmem>>) attributes {dimension_semantics = [#tpu.dimension_semantics<parallel>], iteration_bounds = array<i64: 2>, scalar_prefetch = 0 : i64, scratch_operands = 0 : i64, tpu.core_type = #tpu.core_type<tc>, window_params = [{transform_indices = @transform_0, window_bounds = array<i64: 256, 40>}, {pipeline_mode = #tpu.pipeline_mode<synchronous>, transform_indices = @transform_1, window_bounds = array<i64: 40, 128>}, {pipeline_mode = #tpu.pipeline_mode<synchronous>, transform_indices = @transform_2, window_bounds = array<i64: 1, 128>}, {transform_indices = @transform_3, window_bounds = array<i64: 256, 128>}]} {
    %c0 = arith.constant 0 : index
    %c0_0 = arith.constant 0 : index
    %0 = vector.load %arg1[%c0, %c0_0] : memref<256x40xf32, #tpu.memory_space<vmem>>, vector<256x40xf32>
    %c0_1 = arith.constant 0 : index
    %c0_2 = arith.constant 0 : index
    %1 = vector.load %arg2[%c0_1, %c0_2] : memref<40x128xf32, #tpu.memory_space<vmem>>, vector<40x128xf32>
    %cst = arith.constant dense<0.000000e+00> : vector<256x128xf32>
    %2 = tpu.matmul %0, %1, %cst {dimension_numbers = #tpu.dot_dimension_numbers<[1], [0], [0], [1], [0, 0, 1, 1], [], []>} : vector<256x40xf32>, vector<40x128xf32>, vector<256x128xf32> -> vector<256x128xf32>
    %c0_3 = arith.constant 0 : index
    %c0_4 = arith.constant 0 : index
    %3 = vector.load %arg3[%c0_3, %c0_4] : memref<1x128xf32, #tpu.memory_space<vmem>>, vector<1x128xf32>
    %4 = vector.broadcast %3 : vector<1x128xf32> to vector<256x128xf32>
    %5 = arith.addf %2, %4 : vector<256x128xf32>
    %cst_5 = arith.constant 0.000000e+00 : f32
    %6 = vector.broadcast %cst_5 : f32 to vector<256x128xf32>
    %7 = arith.cmpf ogt, %5, %6 : vector<256x128xf32>
    %cst_6 = arith.constant 0.00999999977 : f32
    %8 = vector.broadcast %cst_6 : f32 to vector<256x128xf32>
    %9 = arith.mulf %8, %5 : vector<256x128xf32>
    %10 = arith.select %7, %5, %9 : vector<256x128xi1>, vector<256x128xf32>
    %c0_7 = arith.constant 0 : index
    %c0_8 = arith.constant 0 : index
    %11 = vector.load %arg4[%c0_7, %c0_8] : memref<256x128xf32, #tpu.memory_space<vmem>>, vector<256x128xf32>
    tpu.vector_store %arg4[%c0_7, %c0_8], %10 {strides = array<i32>} : memref<256x128xf32, #tpu.memory_space<vmem>>, vector<256x128xf32>,
    return
  }
  func.func @transform_0(%arg0: i32) -> (i32, i32) {
    %c0_i32 = arith.constant 0 : i32
    %c0_i32_0 = arith.constant 0 : i32
    return %arg0, %c0_i32 : i32, i32
  }
  func.func @transform_1(%arg0: i32) -> (i32, i32) {
    %c0_i32 = arith.constant 0 : i32
    %c0_i32_0 = arith.constant 0 : i32
    %c0_i32_1 = arith.constant 0 : i32
    return %c0_i32, %c0_i32_0 : i32, i32
  }
  func.func @transform_2(%arg0: i32) -> (i32, i32) {
    %c0_i32 = arith.constant 0 : i32
    %c0_i32_0 = arith.constant 0 : i32
    %c0_i32_1 = arith.constant 0 : i32
    return %c0_i32, %c0_i32_0 : i32, i32
  }
  func.func @transform_3(%arg0: i32) -> (i32, i32) {
    %c0_i32 = arith.constant 0 : i32
    %c0_i32_0 = arith.constant 0 : i32
    return %arg0, %c0_i32 : i32, i32
  }
}

</mosaic_0001>

<llo_original>
// kernel: tpu_custom_call.1
$region0: #{tpu_custom_call.1}
  #allocation0 [shape = 'u32[]', space=smem, size = 0x4, offset = 0x4, fixed_abs, tag = 'smem constant byte address 0x4 - core index']
  #allocation1 [shape = 'u32[144,128]{1,0:T(1,128)}', space=vmem, size = 0x12000, scoped, tag = 'internal scratch']
  %s0 = inlined_call_operand.vmem [shape: f32[512,40], index: 0, kind: input, shape index: {}]
  %s1 = inlined_call_operand.vmem [shape: f32[40,128], index: 1, kind: input, shape index: {}]
  %s2 = inlined_call_operand.vmem [shape: f32[1,128], index: 2, kind: input, shape index: {}]
  %s3 = inlined_call_operand.hbm [shape: f32[512,128], index: 3, kind: output, shape index: {}]
  %s4 = sld [smem:[#allocation0]]
  $region45: #{tpu_custom_call.1} parent=0
    _
  %s6 = ssub.s32 1, %s4
  %s7 = scalar_select 0, %s6, %s4
  $region1: #{tpu_custom_call.1} parent=0
    #allocation2 [shape = 'u8[262144]{0}', space=vmem, size = 0x40000, scoped, tag = 'output window, operand 0']
    #allocation3 [shape = 's32[2]{0}', space=sflag, size = 0x8, scoped, tag = 'scoped memory for tpu_custom_call.1']
    %8 = vsyncpa [#allocation3], 0
    %s9 = scalar_lea.sflag [#allocation3], 1
    %10 = vsyncpa %s9, 0
    loop: start=0, step=1, limit=4
    $region2: #{tpu_custom_call.1} parent=1 // loop_pre_header
      _
    $region3: #{tpu_custom_call.1} parent=1 // loop_header
      %s12 = sphi 0, %s16
      %p13 = scmp.ge.s32.totalorder %s12, 4
      %s22 = sphi 0, %s24
      %s25 = sphi 0, %s22
      %s26 = sphi 0, %s25
      %s42 = sphi 0, %s26
      %s46 = sphi 0, %s46
      %s48 = sphi 0, %s46
      %s49 = sphi 0, %s48
      %s63 = sphi 0, %s49
      %s67 = sphi 0, %s67
      %s69 = sphi 0, %s67
      %s70 = sphi 0, %s69
      %s84 = sphi 0, %s70
      %s90 = sphi 0, %s92
      %s93 = sphi 0, %s90
      %s94 = sphi 0, %s93
      %s110 = sphi 0, %s94
    $region4: #{tpu_custom_call.1} parent=1 // loop_header_branch
      %15 = sbr.rel (%p13) target = $region8
    $region5: #{tpu_custom_call.1} parent=1 // loop_body
      %s17 = ssub.s32 %s12, 1
      %s18 = ssub.s32 %s12, 2
      %s19 = sadd.s32 %s12, 1
      %s20 = ssub.s32 %s12, %s19
      %p21 = scmp.eq.s32.totalorder %s20, 0
      %s23 = sadd.s32 %s22, 1
      %s24 = scalar_select %p21, %s22, %s23
      %p27 = pneg %p21
      %p28 = scmp.eq.s32.totalorder %s12, 1
      %p29 = por %p27, %p28
      %p30 = scmp.ne.s32.totalorder %s22, %s25
      %p31 = scmp.eq.s32.totalorder %s12, 0
      %p32 = por %p30, %p31
      %p33 = scmp.ne.s32.totalorder %s22, %s25
      %p34 = scmp.eq.s32.totalorder %s17, 1
      %p35 = por %p33, %p34
      %p36 = scmp.ne.s32.totalorder %s25, %s26
      %p37 = scmp.eq.s32.totalorder %s17, 0
      %p38 = por %p36, %p37
      %p39 = scmp.ne.s32.totalorder %s25, %s26
      %p40 = scmp.eq.s32.totalorder %s18, 1
      %p41 = por %p39, %p40
      %p43 = scmp.ne.s32.totalorder %s26, %s42
      %p44 = scmp.eq.s32.totalorder %s18, 0
      %p45 = por %p43, %p44
      %s47 = sadd.s32 %s46, 1
      %p50 = scmp.eq.s32.totalorder %s12, 1
      %p51 = scmp.ne.s32.totalorder %s46, %s48
      %p52 = scmp.eq.s32.totalorder %s12, 0
      %p53 = por %p51, %p52
      %p54 = scmp.ne.s32.totalorder %s46, %s48
      %p55 = scmp.eq.s32.totalorder %s17, 1
      %p56 = por %p54, %p55
      %p57 = scmp.ne.s32.totalorder %s48, %s49
      %p58 = scmp.eq.s32.totalorder %s17, 0
      %p59 = por %p57, %p58
      %p60 = scmp.ne.s32.totalorder %s48, %s49
      %p61 = scmp.eq.s32.totalorder %s18, 1
      %p62 = por %p60, %p61
      %p64 = scmp.ne.s32.totalorder %s49, %s63
      %p65 = scmp.eq.s32.totalorder %s18, 0
      %p66 = por %p64, %p65
      %s68 = sadd.s32 %s67, 1
      %p71 = scmp.eq.s32.totalorder %s12, 1
      %p72 = scmp.ne.s32.totalorder %s67, %s69
      %p73 = scmp.eq.s32.totalorder %s12, 0
      %p74 = por %p72, %p73
      %p75 = scmp.ne.s32.totalorder %s67, %s69
      %p76 = scmp.eq.s32.totalorder %s17, 1
      %p77 = por %p75, %p76
      %p78 = scmp.ne.s32.totalorder %s69, %s70
      %p79 = scmp.eq.s32.totalorder %s17, 0
      %p80 = por %p78, %p79
      %p81 = scmp.ne.s32.totalorder %s69, %s70
      %p82 = scmp.eq.s32.totalorder %s18, 1
      %p83 = por %p81, %p82
      %p85 = scmp.ne.s32.totalorder %s70, %s84
      %p86 = scmp.eq.s32.totalorder %s18, 0
      %p87 = por %p85, %p86
      %s88 = ssub.s32 %s12, %s19
      %p89 = scmp.eq.s32.totalorder %s88, 0
      %s91 = sadd.s32 %s90, 1
      %s92 = scalar_select %p89, %s90, %s91
      %p95 = pneg %p89
      %p96 = scmp.eq.s32.totalorder %s12, 1
      %p97 = por %p95, %p96
      %p98 = scmp.ne.s32.totalorder %s90, %s93
      %p99 = scmp.eq.s32.totalorder %s12, 0
      %p100 = por %p98, %p99
      %p101 = scmp.ne.s32.totalorder %s90, %s93
      %p102 = scmp.eq.s32.totalorder %s17, 1
      %p103 = por %p101, %p102
      %p104 = scmp.ne.s32.totalorder %s93, %s94
      %p105 = scmp.eq.s32.totalorder %s17, 0
      %p106 = por %p104, %p105
      %p107 = scmp.ne.s32.totalorder %s93, %s94
      %p108 = scmp.eq.s32.totalorder %s18, 1
      %p109 = por %p107, %p108
      %p111 = scmp.ne.s32.totalorder %s94, %s110
      %p112 = scmp.eq.s32.totalorder %s18, 0
      %p113 = por %p111, %p112
      %p114 = scmp.le.s32.totalorder 1, %s12
      %p115 = scmp.lt.s32.totalorder %s12, 3
      %p116 = pnand %p114, %p115
      %p117 = pneg %p116
      // Predicated region
      $region9: #{tpu_custom_call.1} parent=5 // pred_check
        _
      $region10: #{tpu_custom_call.1} parent=5 // pred_check_branch
        %119 = sbr.rel (%p116) target = $region12
      $region11: #{tpu_custom_call.1} parent=5 // pred_region
        %s120 = ssub.s32 %s12, 1
        // Predicated region
        $region13: #{tpu_custom_call.1} parent=11 // pred_check
          %p121 = pneg %p59
        $region14: #{tpu_custom_call.1} parent=11 // pred_check_branch
          %123 = sbr.rel (%p121) target = $region16
        $region15: #{tpu_custom_call.1} parent=11 // pred_region
          _
        $region16: #{tpu_custom_call.1} parent=11 // pred_fallthru
          _
        // Predicated region
        $region17: #{tpu_custom_call.1} parent=11 // pred_check
          %p124 = pneg %p80
        $region18: #{tpu_custom_call.1} parent=11 // pred_check_branch
          %126 = sbr.rel (%p124) target = $region20
        $region19: #{tpu_custom_call.1} parent=11 // pred_region
          _
        $region20: #{tpu_custom_call.1} parent=11 // pred_fallthru
          _
      $region12: #{tpu_custom_call.1} parent=5 // pred_fallthru
        _
      %p127 = scmp.lt.s32.totalorder %s12, 2
      // Predicated region
      $region21: #{tpu_custom_call.1} parent=5 // pred_check
        %p128 = pneg %p127
      $region22: #{tpu_custom_call.1} parent=5 // pred_check_branch
        %130 = sbr.rel (%p128) target = $region24
      $region23: #{tpu_custom_call.1} parent=5 // pred_region
        // Predicated region
        $region25: #{tpu_custom_call.1} parent=23 // pred_check
          %p131 = pneg %p32
        $region26: #{tpu_custom_call.1} parent=23 // pred_check_branch
          %133 = sbr.rel (%p131) target = $region28
        $region27: #{tpu_custom_call.1} parent=23 // pred_region
          %s134 = smul.u32 32, %s12
          %p135 = scmp.lt.s32.totalorder %s134, 63
          %s136 = scalar_select %p135, %s134, 63
          %s137 = smul.addr %s136, 8
          %s138 = scalar_lea.vmem %s0, %s137
          %s139 = smul.u32 32, %s12
        $region28: #{tpu_custom_call.1} parent=23 // pred_fallthru
          _
      $region24: #{tpu_custom_call.1} parent=5 // pred_fallthru
        _
      %p140 = scmp.le.s32.totalorder 1, %s12
      %p141 = scmp.lt.s32.totalorder %s12, 3
      %p142 = pnand %p140, %p141
      %p143 = pneg %p142
      // Predicated region
      $region29: #{tpu_custom_call.1} parent=5 // pred_check
        _
      $region30: #{tpu_custom_call.1} parent=5 // pred_check_branch
        %145 = sbr.rel (%p142) target = $region32
      $region31: #{tpu_custom_call.1} parent=5 // pred_region
        %s146 = ssub.s32 %s12, 1
        %s147 = smul.u32 32, %s17
        %p148 = scmp.lt.s32.totalorder %s147, 63
        %s149 = scalar_select %p148, %s147, 63
        %s150 = smul.addr %s149, 8
        %s151 = scalar_lea.vmem %s0, %s150
        %p152 = pneg %p38
        %p153 = pneg %p35
        %p154 = pneg %p59
        %p155 = pneg %p56
        %p156 = pneg %p80
        %p157 = pneg %p77
        %p158 = pneg %p106
        %p159 = pneg %p103
        %s160 = sand.u32 %s93, 1
        %s161 = scalar_lea.sflag [#allocation3], %s160
        %s162 = sand.u32 %s93, 1
        %s163 = smul.addr %s162, 256
        %s164 = scalar_lea.vmem [#allocation2], %s163
        %s165 = smul.u32 32, %s17
        %p166 = scmp.lt.s32.totalorder %s165, 63
        %s167 = scalar_select %p166, %s165, 63
        %s168 = smul.addr %s167, 8
        %s169 = scalar_lea.vmem %s0, %s168
        %s170 = smul.u32 32, %s17
        %s171 = smul.u32 32, %s17
        %v172 = vld [vmem:[%s169] sm:$0xff]
        %v173 = vld [vmem:[%s169 + $0x8] sm:$0xff]
        %v174 = vld [vmem:[%s169 + $0x10] sm:$0xff]
        %v175 = vld [vmem:[%s169 + $0x18] sm:$0xff]
        %v176 = vld [vmem:[%s169 + $0x20] sm:$0xff]
        %v177 = vld [vmem:[%s169 + $0x28] sm:$0xff]
        %v178 = vld [vmem:[%s169 + $0x30] sm:$0xff]
        %v179 = vld [vmem:[%s169 + $0x38] sm:$0xff]
        %v180 = vld [vmem:[%s169 + $0x40] sm:$0xff]
        %v181 = vld [vmem:[%s169 + $0x48] sm:$0xff]
        %v182 = vld [vmem:[%s169 + $0x50] sm:$0xff]
        %v183 = vld [vmem:[%s169 + $0x58] sm:$0xff]
        %v184 = vld [vmem:[%s169 + $0x60] sm:$0xff]
        %v185 = vld [vmem:[%s169 + $0x68] sm:$0xff]
        %v186 = vld [vmem:[%s169 + $0x70] sm:$0xff]
        %v187 = vld [vmem:[%s169 + $0x78] sm:$0xff]
        %v188 = vld [vmem:[%s169 + $0x80] sm:$0xff]
        %v189 = vld [vmem:[%s169 + $0x88] sm:$0xff]
        %v190 = vld [vmem:[%s169 + $0x90] sm:$0xff]
        %v191 = vld [vmem:[%s169 + $0x98] sm:$0xff]
        %v192 = vld [vmem:[%s169 + $0xa0] sm:$0xff]
        %v193 = vld [vmem:[%s169 + $0xa8] sm:$0xff]
        %v194 = vld [vmem:[%s169 + $0xb0] sm:$0xff]
        %v195 = vld [vmem:[%s169 + $0xb8] sm:$0xff]
        %v196 = vld [vmem:[%s169 + $0xc0] sm:$0xff]
        %v197 = vld [vmem:[%s169 + $0xc8] sm:$0xff]
        %v198 = vld [vmem:[%s169 + $0xd0] sm:$0xff]
        %v199 = vld [vmem:[%s169 + $0xd8] sm:$0xff]
        %v200 = vld [vmem:[%s169 + $0xe0] sm:$0xff]
        %v201 = vld [vmem:[%s169 + $0xe8] sm:$0xff]
        %v202 = vld [vmem:[%s169 + $0xf0] sm:$0xff]
        %v203 = vld [vmem:[%s169 + $0xf8] sm:$0xff]
        %v204 = vld [vmem:[%s1] sm:$0xff]
        %v205 = vld [vmem:[%s1 + $0x8] sm:$0xff]
        %v206 = vld [vmem:[%s1 + $0x10] sm:$0xff]
        %v207 = vld [vmem:[%s1 + $0x18] sm:$0xff]
        %v208 = vld [vmem:[%s1 + $0x20] sm:$0xff]
        %v209 = vld [vmem:[%s2] sm:$0x1]
        %v211 = vlaneseq
        %v212 = vshrl.u32 %v211, 7
        %v213 = vsub.s32 0, %v212
        %v214 = vrot.slane %v209, %v213
        %vm216 = vcmask 326656
        %v218 = vsel %vm216, %v172, 0
        %v221 = vsel %vm216, %v173, 0
        %v224 = vsel %vm216, %v174, 0
        %v227 = vsel %vm216, %v175, 0
        %v230 = vsel %vm216, %v176, 0
        %v233 = vsel %vm216, %v177, 0
        %v236 = vsel %vm216, %v178, 0
        %v239 = vsel %vm216, %v179, 0
        %v242 = vsel %vm216, %v180, 0
        %v245 = vsel %vm216, %v181, 0
        %v248 = vsel %vm216, %v182, 0
        %v251 = vsel %vm216, %v183, 0
        %v254 = vsel %vm216, %v184, 0
        %v257 = vsel %vm216, %v185, 0
        %v260 = vsel %vm216, %v186, 0
        %v263 = vsel %vm216, %v187, 0
        %v266 = vsel %vm216, %v188, 0
        %v269 = vsel %vm216, %v189, 0
        %v272 = vsel %vm216, %v190, 0
        %v275 = vsel %vm216, %v191, 0
        %v278 = vsel %vm216, %v192, 0
        %v281 = vsel %vm216, %v193, 0
        %v284 = vsel %vm216, %v194, 0
        %v287 = vsel %vm216, %v195, 0
        %v290 = vsel %vm216, %v196, 0
        %v293 = vsel %vm216, %v197, 0
        %v296 = vsel %vm216, %v198, 0
        %v299 = vsel %vm216, %v199, 0
        %v302 = vsel %vm216, %v200, 0
        %v305 = vsel %vm216, %v201, 0
        %v308 = vsel %vm216, %v202, 0
        %v311 = vsel %vm216, %v203, 0
        %313 = vmatprep.subr.mxu0 0.0
        %314 = vmatpush1.msra.mxu0 %v204
        %315 = vmatprep.subr.mxu0 0.0
        %316 = vmatpush1.msra.mxu0 %v205
        %317 = vmatprep.subr.mxu0 0.0
        %318 = vmatpush1.msra.mxu0 %v206
        %319 = vmatprep.subr.mxu0 0.0
        %320 = vmatpush1.msra.mxu0 %v207
        %321 = vmatprep.subr.mxu0 0.0
        %322 = vmatpush1.msra.mxu0 %v208
        %323 = vmatprep.subr.mxu0 0.0
        %324 = vmatpush1.msra.mxu0 0.0
        %325 = vmatprep.subr.mxu0 0.0
        %326 = vmatpush1.msra.mxu0 0.0
        %327 = vmatprep.subr.mxu0 0.0
        %328 = vmatpush1.msra.mxu0 0.0
        %329 = vmatprep.subr.mxu0 0.0
        %330 = vmatpush1.msra.mxu0 0.0
        %331 = vmatprep.subr.mxu0 0.0
        %332 = vmatpush1.msra.mxu0 0.0
        %333 = vmatprep.subr.mxu0 0.0
        %334 = vmatpush1.msra.mxu0 0.0
        %335 = vmatprep.subr.mxu0 0.0
        %336 = vmatpush1.msra.mxu0 0.0
        %337 = vmatprep.subr.mxu0 0.0
        %338 = vmatpush1.msra.mxu0 0.0
        %339 = vmatprep.subr.mxu0 0.0
        %340 = vmatpush1.msra.mxu0 0.0
        %341 = vmatprep.subr.mxu0 0.0
        %342 = vmatpush1.msra.mxu0 0.0
        %343 = vmatprep.subr.mxu0 0.0
        %344 = vmatpush1.msra.mxu0 0.0
        %345 = vmatprep.subr.mxu0 0.0
        %346 = vmatpush1.msra.mxu0 0.0
        %347 = vmatprep.subr.mxu0 0.0
        %348 = vmatpush1.msra.mxu0 0.0
        %349 = vmatprep.subr.mxu0 0.0
        %350 = vmatpush1.msra.mxu0 0.0
        %351 = vmatprep.subr.mxu0 0.0
        %352 = vmatpush1.msra.mxu0 0.0
        %353 = vmatprep.subr.mxu0 0.0
        %354 = vmatpush1.msra.mxu0 0.0
        %355 = vmatprep.subr.mxu0 0.0
        %356 = vmatpush1.msra.mxu0 0.0
        %357 = vmatprep.subr.mxu0 0.0
        %358 = vmatpush1.msra.mxu0 0.0
        %359 = vmatprep.subr.mxu0 0.0
        %360 = vmatpush1.msra.mxu0 0.0
        %361 = vmatprep.subr.mxu0 0.0
        %362 = vmatpush1.msra.mxu0 0.0
        %363 = vmatprep.subr.mxu0 0.0
        %364 = vmatpush1.msra.mxu0 0.0
        %365 = vmatprep.subr.mxu0 0.0
        %366 = vmatpush1.msra.mxu0 0.0
        %367 = vmatprep.subr.mxu0 0.0
        %368 = vmatpush1.msra.mxu0 0.0
        %369 = vmatprep.subr.mxu0 0.0
        %370 = vmatpush1.msra.mxu0 0.0
        %371 = vmatprep.subr.mxu0 0.0
        %372 = vmatpush1.msra.mxu0 0.0
        %373 = vmatprep.subr.mxu0 0.0
        %374 = vmatpush1.msra.mxu0 0.0
        %375 = vmatprep.subr.mxu0 0.0
        %376 = vmatpush1.msra.mxu0 0.0
        %377 = vmatprep.mubr.f32.mxu0 0.0
        %378 = vmatmul.mubr.f32.gmra.mrb[0].mxu0 %v218
        %v379 = vpop.f32.mrb[0].mxu0
        %v380 = vadd.f32 %v214, %v379
        %v381 = vpop.f32.mrb[0].mxu0
        %382 = vmatprep.mubr.f32.mxu0 0.0
        %383 = vmatmul.mubr.f32.gmra.mrb[0].mxu0 %v221
        %v384 = vpop.f32.mrb[0].mxu0
        %v385 = vadd.f32 %v214, %v384
        %v386 = vpop.f32.mrb[0].mxu0
        %387 = vmatprep.mubr.f32.mxu0 0.0
        %388 = vmatmul.mubr.f32.gmra.mrb[0].mxu0 %v224
        %v389 = vpop.f32.mrb[0].mxu0
        %v390 = vadd.f32 %v214, %v389
        %v391 = vpop.f32.mrb[0].mxu0
        %392 = vmatprep.mubr.f32.mxu0 0.0
        %393 = vmatmul.mubr.f32.gmra.mrb[0].mxu0 %v227
        %v394 = vpop.f32.mrb[0].mxu0
        %v395 = vadd.f32 %v214, %v394
        %v396 = vpop.f32.mrb[0].mxu0
        %397 = vmatprep.mubr.f32.mxu0 0.0
        %398 = vmatmul.mubr.f32.gmra.mrb[0].mxu0 %v230
        %v399 = vpop.f32.mrb[0].mxu0
        %v400 = vadd.f32 %v214, %v399
        %v401 = vpop.f32.mrb[0].mxu0
        %402 = vmatprep.mubr.f32.mxu0 0.0
        %403 = vmatmul.mubr.f32.gmra.mrb[0].mxu0 %v233
        %v404 = vpop.f32.mrb[0].mxu0
        %v405 = vadd.f32 %v214, %v404
        %v406 = vpop.f32.mrb[0].mxu0
        %407 = vmatprep.mubr.f32.mxu0 0.0
        %408 = vmatmul.mubr.f32.gmra.mrb[0].mxu0 %v236
        %v409 = vpop.f32.mrb[0].mxu0
        %v410 = vadd.f32 %v214, %v409
        %v411 = vpop.f32.mrb[0].mxu0
        %412 = vmatprep.mubr.f32.mxu0 0.0
        %413 = vmatmul.mubr.f32.gmra.mrb[0].mxu0 %v239
        %v414 = vpop.f32.mrb[0].mxu0
        %v415 = vadd.f32 %v214, %v414
        %v416 = vpop.f32.mrb[0].mxu0
        %417 = vmatprep.mubr.f32.mxu0 0.0
        %418 = vmatmul.mubr.f32.gmra.mrb[0].mxu0 %v242
        %v419 = vpop.f32.mrb[0].mxu0
        %v420 = vadd.f32 %v214, %v419
        %v421 = vpop.f32.mrb[0].mxu0
        %422 = vmatprep.mubr.f32.mxu0 0.0
        %423 = vmatmul.mubr.f32.gmra.mrb[0].mxu0 %v245
        %v424 = vpop.f32.mrb[0].mxu0
        %v425 = vadd.f32 %v214, %v424
        %v426 = vpop.f32.mrb[0].mxu0
        %427 = vmatprep.mubr.f32.mxu0 0.0
        %428 = vmatmul.mubr.f32.gmra.mrb[0].mxu0 %v248
        %v429 = vpop.f32.mrb[0].mxu0
        %v430 = vadd.f32 %v214, %v429
        %v431 = vpop.f32.mrb[0].mxu0
        %432 = vmatprep.mubr.f32.mxu0 0.0
        %433 = vmatmul.mubr.f32.gmra.mrb[0].mxu0 %v251
        %v434 = vpop.f32.mrb[0].mxu0
        %v435 = vadd.f32 %v214, %v434
        %v436 = vpop.f32.mrb[0].mxu0
        %437 = vmatprep.mubr.f32.mxu0 0.0
        %438 = vmatmul.mubr.f32.gmra.mrb[0].mxu0 %v254
        %v439 = vpop.f32.mrb[0].mxu0
        %v440 = vadd.f32 %v214, %v439
        %v441 = vpop.f32.mrb[0].mxu0
        %442 = vmatprep.mubr.f32.mxu0 0.0
        %443 = vmatmul.mubr.f32.gmra.mrb[0].mxu0 %v257
        %v444 = vpop.f32.mrb[0].mxu0
        %v445 = vadd.f32 %v214, %v444
        %v446 = vpop.f32.mrb[0].mxu0
        %447 = vmatprep.mubr.f32.mxu0 0.0
        %448 = vmatmul.mubr.f32.gmra.mrb[0].mxu0 %v260
        %v449 = vpop.f32.mrb[0].mxu0
        %v450 = vadd.f32 %v214, %v449
        %v451 = vpop.f32.mrb[0].mxu0
        %452 = vmatprep.mubr.f32.mxu0 0.0
        %453 = vmatmul.mubr.f32.gmra.mrb[0].mxu0 %v263
        %v454 = vpop.f32.mrb[0].mxu0
        %v455 = vadd.f32 %v214, %v454
        %v456 = vpop.f32.mrb[0].mxu0
        %457 = vmatprep.mubr.f32.mxu0 0.0
        %458 = vmatmul.mubr.f32.gmra.mrb[0].mxu0 %v266
        %v459 = vpop.f32.mrb[0].mxu0
        %v460 = vadd.f32 %v214, %v459
        %v461 = vpop.f32.mrb[0].mxu0
        %462 = vmatprep.mubr.f32.mxu0 0.0
        %463 = vmatmul.mubr.f32.gmra.mrb[0].mxu0 %v269
        %v464 = vpop.f32.mrb[0].mxu0
        %v465 = vadd.f32 %v214, %v464
        %v466 = vpop.f32.mrb[0].mxu0
        %467 = vmatprep.mubr.f32.mxu0 0.0
        %468 = vmatmul.mubr.f32.gmra.mrb[0].mxu0 %v272
        %v469 = vpop.f32.mrb[0].mxu0
        %v470 = vadd.f32 %v214, %v469
        %v471 = vpop.f32.mrb[0].mxu0
        %472 = vmatprep.mubr.f32.mxu0 0.0
        %473 = vmatmul.mubr.f32.gmra.mrb[0].mxu0 %v275
        %v474 = vpop.f32.mrb[0].mxu0
        %v475 = vadd.f32 %v214, %v474
        %v476 = vpop.f32.mrb[0].mxu0
        %477 = vmatprep.mubr.f32.mxu0 0.0
        %478 = vmatmul.mubr.f32.gmra.mrb[0].mxu0 %v278
        %v479 = vpop.f32.mrb[0].mxu0
        %v480 = vadd.f32 %v214, %v479
        %v481 = vpop.f32.mrb[0].mxu0
        %482 = vmatprep.mubr.f32.mxu0 0.0
        %483 = vmatmul.mubr.f32.gmra.mrb[0].mxu0 %v281
        %v484 = vpop.f32.mrb[0].mxu0
        %v485 = vadd.f32 %v214, %v484
        %v486 = vpop.f32.mrb[0].mxu0
        %487 = vmatprep.mubr.f32.mxu0 0.0
        %488 = vmatmul.mubr.f32.gmra.mrb[0].mxu0 %v284
        %v489 = vpop.f32.mrb[0].mxu0
        %v490 = vadd.f32 %v214, %v489
        %v491 = vpop.f32.mrb[0].mxu0
        %492 = vmatprep.mubr.f32.mxu0 0.0
        %493 = vmatmul.mubr.f32.gmra.mrb[0].mxu0 %v287
        %v494 = vpop.f32.mrb[0].mxu0
        %v495 = vadd.f32 %v214, %v494
        %v496 = vpop.f32.mrb[0].mxu0
        %497 = vmatprep.mubr.f32.mxu0 0.0
        %498 = vmatmul.mubr.f32.gmra.mrb[0].mxu0 %v290
        %v499 = vpop.f32.mrb[0].mxu0
        %v500 = vadd.f32 %v214, %v499
        %v501 = vpop.f32.mrb[0].mxu0
        %502 = vmatprep.mubr.f32.mxu0 0.0
        %503 = vmatmul.mubr.f32.gmra.mrb[0].mxu0 %v293
        %v504 = vpop.f32.mrb[0].mxu0
        %v505 = vadd.f32 %v214, %v504
        %v506 = vpop.f32.mrb[0].mxu0
        %507 = vmatprep.mubr.f32.mxu0 0.0
        %508 = vmatmul.mubr.f32.gmra.mrb[0].mxu0 %v296
        %v509 = vpop.f32.mrb[0].mxu0
        %v510 = vadd.f32 %v214, %v509
        %v511 = vpop.f32.mrb[0].mxu0
        %512 = vmatprep.mubr.f32.mxu0 0.0
        %513 = vmatmul.mubr.f32.gmra.mrb[0].mxu0 %v299
        %v514 = vpop.f32.mrb[0].mxu0
        %v515 = vadd.f32 %v214, %v514
        %v516 = vpop.f32.mrb[0].mxu0
        %517 = vmatprep.mubr.f32.mxu0 0.0
        %518 = vmatmul.mubr.f32.gmra.mrb[0].mxu0 %v302
        %v519 = vpop.f32.mrb[0].mxu0
        %v520 = vadd.f32 %v214, %v519
        %v521 = vpop.f32.mrb[0].mxu0
        %522 = vmatprep.mubr.f32.mxu0 0.0
        %523 = vmatmul.mubr.f32.gmra.mrb[0].mxu0 %v305
        %v524 = vpop.f32.mrb[0].mxu0
        %v525 = vadd.f32 %v214, %v524
        %v526 = vpop.f32.mrb[0].mxu0
        %527 = vmatprep.mubr.f32.mxu0 0.0
        %528 = vmatmul.mubr.f32.gmra.mrb[0].mxu0 %v308
        %v529 = vpop.f32.mrb[0].mxu0
        %v530 = vadd.f32 %v214, %v529
        %v531 = vpop.f32.mrb[0].mxu0
        %532 = vmatprep.mubr.f32.mxu0 0.0
        %533 = vmatmul.mubr.f32.gmra.mrb[0].mxu0 %v311
        %v534 = vpop.f32.mrb[0].mxu0
        %v535 = vadd.f32 %v214, %v534
        %v536 = vpop.f32.mrb[0].mxu0
        %537 = vdwg.mxu0
        %vm538 = vcmp.gt.f32.partialorder %v380, 0.0
        %vm539 = vcmp.gt.f32.partialorder %v385, 0.0
        %vm540 = vcmp.gt.f32.partialorder %v390, 0.0
        %vm541 = vcmp.gt.f32.partialorder %v395, 0.0
        %vm542 = vcmp.gt.f32.partialorder %v400, 0.0
        %vm543 = vcmp.gt.f32.partialorder %v405, 0.0
        %vm544 = vcmp.gt.f32.partialorder %v410, 0.0
        %vm545 = vcmp.gt.f32.partialorder %v415, 0.0
        %vm546 = vcmp.gt.f32.partialorder %v420, 0.0
        %vm547 = vcmp.gt.f32.partialorder %v425, 0.0
        %vm548 = vcmp.gt.f32.partialorder %v430, 0.0
        %vm549 = vcmp.gt.f32.partialorder %v435, 0.0
        %vm550 = vcmp.gt.f32.partialorder %v440, 0.0
        %vm551 = vcmp.gt.f32.partialorder %v445, 0.0
        %vm552 = vcmp.gt.f32.partialorder %v450, 0.0
        %vm553 = vcmp.gt.f32.partialorder %v455, 0.0
        %vm554 = vcmp.gt.f32.partialorder %v460, 0.0
        %vm555 = vcmp.gt.f32.partialorder %v465, 0.0
        %vm556 = vcmp.gt.f32.partialorder %v470, 0.0
        %vm557 = vcmp.gt.f32.partialorder %v475, 0.0
        %vm558 = vcmp.gt.f32.partialorder %v480, 0.0
        %vm559 = vcmp.gt.f32.partialorder %v485, 0.0
        %vm560 = vcmp.gt.f32.partialorder %v490, 0.0
        %vm561 = vcmp.gt.f32.partialorder %v495, 0.0
        %vm562 = vcmp.gt.f32.partialorder %v500, 0.0
        %vm563 = vcmp.gt.f32.partialorder %v505, 0.0
        %vm564 = vcmp.gt.f32.partialorder %v510, 0.0
        %vm565 = vcmp.gt.f32.partialorder %v515, 0.0
        %vm566 = vcmp.gt.f32.partialorder %v520, 0.0
        %vm567 = vcmp.gt.f32.partialorder %v525, 0.0
        %vm568 = vcmp.gt.f32.partialorder %v530, 0.0
        %vm569 = vcmp.gt.f32.partialorder %v535, 0.0
        %v570 = vmul.f32 %v380, 0.01
        %v571 = vmul.f32 %v385, 0.01
        %v572 = vmul.f32 %v390, 0.01
        %v573 = vmul.f32 %v395, 0.01
        %v574 = vmul.f32 %v400, 0.01
        %v575 = vmul.f32 %v405, 0.01
        %v576 = vmul.f32 %v410, 0.01
        %v577 = vmul.f32 %v415, 0.01
        %v578 = vmul.f32 %v420, 0.01
        %v579 = vmul.f32 %v425, 0.01
        %v580 = vmul.f32 %v430, 0.01
        %v581 = vmul.f32 %v435, 0.01
        %v582 = vmul.f32 %v440, 0.01
        %v583 = vmul.f32 %v445, 0.01
        %v584 = vmul.f32 %v450, 0.01
        %v585 = vmul.f32 %v455, 0.01
        %v586 = vmul.f32 %v460, 0.01
        %v587 = vmul.f32 %v465, 0.01
        %v588 = vmul.f32 %v470, 0.01
        %v589 = vmul.f32 %v475, 0.01
        %v590 = vmul.f32 %v480, 0.01
        %v591 = vmul.f32 %v485, 0.01
        %v592 = vmul.f32 %v490, 0.01
        %v593 = vmul.f32 %v495, 0.01
        %v594 = vmul.f32 %v500, 0.01
        %v595 = vmul.f32 %v505, 0.01
        %v596 = vmul.f32 %v510, 0.01
        %v597 = vmul.f32 %v515, 0.01
        %v598 = vmul.f32 %v520, 0.01
        %v599 = vmul.f32 %v525, 0.01
        %v600 = vmul.f32 %v530, 0.01
        %v601 = vmul.f32 %v535, 0.01
        %v602 = vsel %vm538, %v380, %v570
        %v603 = vsel %vm539, %v385, %v571
        %v604 = vsel %vm540, %v390, %v572
        %v605 = vsel %vm541, %v395, %v573
        %v606 = vsel %vm542, %v400, %v574
        %v607 = vsel %vm543, %v405, %v575
        %v608 = vsel %vm544, %v410, %v576
        %v609 = vsel %vm545, %v415, %v577
        %v610 = vsel %vm546, %v420, %v578
        %v611 = vsel %vm547, %v425, %v579
        %v612 = vsel %vm548, %v430, %v580
        %v613 = vsel %vm549, %v435, %v581
        %v614 = vsel %vm550, %v440, %v582
        %v615 = vsel %vm551, %v445, %v583
        %v616 = vsel %vm552, %v450, %v584
        %v617 = vsel %vm553, %v455, %v585
        %v618 = vsel %vm554, %v460, %v586
        %v619 = vsel %vm555, %v465, %v587
        %v620 = vsel %vm556, %v470, %v588
        %v621 = vsel %vm557, %v475, %v589
        %v622 = vsel %vm558, %v480, %v590
        %v623 = vsel %vm559, %v485, %v591
        %v624 = vsel %vm560, %v490, %v592
        %v625 = vsel %vm561, %v495, %v593
        %v626 = vsel %vm562, %v500, %v594
        %v627 = vsel %vm563, %v505, %v595
        %v628 = vsel %vm564, %v510, %v596
        %v629 = vsel %vm565, %v515, %v597
        %v630 = vsel %vm566, %v520, %v598
        %v631 = vsel %vm567, %v525, %v599
        %v632 = vsel %vm568, %v530, %v600
        %v633 = vsel %vm569, %v535, %v601
        %634 = vst [vmem:[%s164] sm:$0xff] %v602
        %635 = vst [vmem:[%s164 + $0x8] sm:$0xff] %v603
        %636 = vst [vmem:[%s164 + $0x10] sm:$0xff] %v604
        %637 = vst [vmem:[%s164 + $0x18] sm:$0xff] %v605
        %638 = vst [vmem:[%s164 + $0x20] sm:$0xff] %v606
        %639 = vst [vmem:[%s164 + $0x28] sm:$0xff] %v607
        %640 = vst [vmem:[%s164 + $0x30] sm:$0xff] %v608
        %641 = vst [vmem:[%s164 + $0x38] sm:$0xff] %v609
        %642 = vst [vmem:[%s164 + $0x40] sm:$0xff] %v610
        %643 = vst [vmem:[%s164 + $0x48] sm:$0xff] %v611
        %644 = vst [vmem:[%s164 + $0x50] sm:$0xff] %v612
        %645 = vst [vmem:[%s164 + $0x58] sm:$0xff] %v613
        %646 = vst [vmem:[%s164 + $0x60] sm:$0xff] %v614
        %647 = vst [vmem:[%s164 + $0x68] sm:$0xff] %v615
        %648 = vst [vmem:[%s164 + $0x70] sm:$0xff] %v616
        %649 = vst [vmem:[%s164 + $0x78] sm:$0xff] %v617
        %650 = vst [vmem:[%s164 + $0x80] sm:$0xff] %v618
        %651 = vst [vmem:[%s164 + $0x88] sm:$0xff] %v619
        %652 = vst [vmem:[%s164 + $0x90] sm:$0xff] %v620
        %653 = vst [vmem:[%s164 + $0x98] sm:$0xff] %v621
        %654 = vst [vmem:[%s164 + $0xa0] sm:$0xff] %v622
        %655 = vst [vmem:[%s164 + $0xa8] sm:$0xff] %v623
        %656 = vst [vmem:[%s164 + $0xb0] sm:$0xff] %v624
        %657 = vst [vmem:[%s164 + $0xb8] sm:$0xff] %v625
        %658 = vst [vmem:[%s164 + $0xc0] sm:$0xff] %v626
        %659 = vst [vmem:[%s164 + $0xc8] sm:$0xff] %v627
        %660 = vst [vmem:[%s164 + $0xd0] sm:$0xff] %v628
        %661 = vst [vmem:[%s164 + $0xd8] sm:$0xff] %v629
        %662 = vst [vmem:[%s164 + $0xe0] sm:$0xff] %v630
        %663 = vst [vmem:[%s164 + $0xe8] sm:$0xff] %v631
        %664 = vst [vmem:[%s164 + $0xf0] sm:$0xff] %v632
        %665 = vst [vmem:[%s164 + $0xf8] sm:$0xff] %v633
        %s666 = sand.u32 %s93, 1
        %s667 = scalar_lea.sflag [#allocation3], %s666
        %s668 = sand.u32 %s93, 1
        %s669 = smul.addr %s668, 256
        %s670 = scalar_lea.vmem [#allocation2], %s669
        // Predicated region
        $region33: #{tpu_custom_call.1} parent=31 // pred_check
          %p671 = pneg %p103
        $region34: #{tpu_custom_call.1} parent=31 // pred_check_branch
          %673 = sbr.rel (%p671) target = $region36
        $region35: #{tpu_custom_call.1} parent=31 // pred_region
          %s674 = smul.u32 32, %s17
          %s676 = ssub.s32 4096, 4096
          %677 = vsyncadd %s667, %s676
          %s678 = smul.addr %s674, 128
          %s679 = scalar_lea.hbm %s3, %s678
          %s680 = sshll.u32 %s670, 4
          %s681 = int_to_ptr.vmem [resolvable:$true] %s680
          %686 = dma.vmem_to_hbm [thread:$0]  %s681, 4096, %s679, %s667, 128, 128, 8
        $region36: #{tpu_custom_call.1} parent=31 // pred_fallthru
          _
      $region32: #{tpu_custom_call.1} parent=5 // pred_fallthru
        _
      %p687 = scmp.le.s32.totalorder 2, %s12
      // Predicated region
      $region37: #{tpu_custom_call.1} parent=5 // pred_check
        %p688 = pneg %p687
      $region38: #{tpu_custom_call.1} parent=5 // pred_check_branch
        %690 = sbr.rel (%p688) target = $region40
      $region39: #{tpu_custom_call.1} parent=5 // pred_region
        %s691 = ssub.s32 %s12, 2
        // Predicated region
        $region41: #{tpu_custom_call.1} parent=39 // pred_check
          %p692 = pneg %p109
        $region42: #{tpu_custom_call.1} parent=39 // pred_check_branch
          %694 = sbr.rel (%p692) target = $region44
        $region43: #{tpu_custom_call.1} parent=39 // pred_region
          %s695 = sand.u32 %s94, 1
          %s696 = scalar_lea.sflag [#allocation3], %s695
          %s697 = sand.u32 %s94, 1
          %s698 = smul.addr %s697, 256
          %s699 = scalar_lea.vmem [#allocation2], %s698
          %700 = dma.done %s696, 4096
        $region44: #{tpu_custom_call.1} parent=39 // pred_fallthru
          _
      $region40: #{tpu_custom_call.1} parent=5 // pred_fallthru
        _
    $region6: #{tpu_custom_call.1} parent=1 // loop_footer
      %s16 = sadd.s32 1, %s12
    $region7: #{tpu_custom_call.1} parent=1 // loop_footer_branch
      %11 = sbr.rel target = $region3
    $region8: #{tpu_custom_call.1} parent=1 // loop_exit
      _
    %701 = vsyncpa [#allocation3], 1
    %s702 = scalar_lea.sflag [#allocation3], 1
    %703 = vsyncpa %s702, 1

</llo_original>
